<compile_context>
chip_gen: v7x
topology: tpu7x:2x2x1
jax: 0.10.0
libtpu: 0.0.40
codegen_flags: <defaults>
</compile_context>

<pallas_src>
import functools

import jax
import jax.numpy as jnp
from jax.experimental import pallas as pl
from jax.experimental.pallas import tpu as pltpu


# ---------------------------------------------------------------------------
# Helpers
# ---------------------------------------------------------------------------

def _vmem_budget_bytes():
    """Generation-aware VMEM budget: ~80% of capacity, conservative fallback."""
    try:
        cap = int(pltpu.get_tpu_info().vmem_capacity_bytes)
    except Exception:
        cap = 64 * 1024 * 1024  # v7x per-core floor
    return int(0.8 * cap)


def _zero_pad_hw(x, pad):
    """Zero-pad the first two dims of a 2-D/3-D value by `pad` on each side.

    Done in the value domain (concatenate small zero strips) so there is no
    scratch-ref zeroing and no per-step VMEM->VMEM interior copy.
    """
    if pad == 0:
        return x
    H, W = x.shape[0], x.shape[1]
    tail = x.shape[2:]
    zr = jnp.zeros((pad, W) + tail, x.dtype)
    x = jnp.concatenate([zr, x, zr], axis=0)
    zc = jnp.zeros((H + 2 * pad, pad) + tail, x.dtype)
    return jnp.concatenate([zc, x, zc], axis=1)


# ---------------------------------------------------------------------------
# Kernels
# ---------------------------------------------------------------------------

def _adafm_nchw_kernel(w_ref, b_ref, x_ref, o_ref, *, k, pad, H, W):
    """NCHW-native path: one (image, channel) plane per grid step.

    Layout: H on sublanes, W on lanes (good lane density whenever W is not tiny).
    w_ref : (C*k*k,) f32 SMEM - per-channel taps, residual (+1) already folded
            into the center tap by the wrapper.
    b_ref : (C,)     f32 SMEM
    x_ref : (1, 1, H, W) VMEM block
    o_ref : (1, 1, H, W) VMEM block
    """
    c = pl.program_id(1)
    x = x_ref[0, 0].astype(jnp.float32)                    # (H, W)
    xp = _zero_pad_hw(x, pad)                               # (H+2p, W+2p)
    acc = jnp.zeros((H, W), jnp.float32) + b_ref[c]         # bias-initialized
    base = c * (k * k)
    for i in range(k):                                      # static unrolled taps
        for j in range(k):
            acc = acc + w_ref[base + i * k + j] * xp[i:i + H, j:j + W]
    o_ref[0, 0] = acc.astype(o_ref.dtype)


def _adafm_nhwc_kernel(x_ref, w_ref, b_ref, o_ref, *, k, pad, H, W):
    """C-on-lanes path (C multiple of 128): full lane density on the channel axis.

    x_ref : (1, H, W, Cb) ; w_ref : (k, k, Cb) (center tap has +1 folded in) ;
    b_ref : (1, Cb) ; o_ref : (1, H, W, Cb).
    """
    x = x_ref[0].astype(jnp.float32)                        # (H, W, Cb)
    Cb = x.shape[-1]
    xp = _zero_pad_hw(x, pad)                               # (H+2p, W+2p, Cb)
    acc = jnp.zeros((H, W, Cb), jnp.float32) + b_ref[0].astype(jnp.float32)
    for i in range(k):
        for j in range(k):
            w_ij = w_ref[i, j, :].astype(jnp.float32)       # (Cb,) lane vector
            acc = acc + w_ij * xp[i:i + H, j:j + W, :]
    o_ref[0] = acc.astype(o_ref.dtype)


# ---------------------------------------------------------------------------
# Wrappers
# ---------------------------------------------------------------------------

def _adaptive_fm_nchw(x, w_eff, b_f32, *, k, pad, vmem_limit):
    N, C, H, W = x.shape
    w_flat = w_eff.reshape(-1)                              # (C*k*k,), c-major then (i, j)
    kernel = functools.partial(_adafm_nchw_kernel, k=k, pad=pad, H=H, W=W)
    return pl.pallas_call(
        kernel,
        out_shape=jax.ShapeDtypeStruct((N, C, H, W), x.dtype),
        grid=(N, C),
        in_specs=[
            pl.BlockSpec(memory_space=pltpu.MemorySpace.SMEM),        # weights (scalars)
            pl.BlockSpec(memory_space=pltpu.MemorySpace.SMEM),        # bias (scalars)
            pl.BlockSpec((1, 1, H, W), lambda n, c: (n, c, 0, 0)),    # x plane
        ],
        out_specs=pl.BlockSpec((1, 1, H, W), lambda n, c: (n, c, 0, 0)),
        compiler_params=pltpu.CompilerParams(
            dimension_semantics=("parallel", "parallel"),
            vmem_limit_bytes=vmem_limit,
        ),
    )(w_flat, b_f32, x)


def _adaptive_fm_nhwc(x, w_eff, b_f32, *, k, pad, vmem_limit):
    N, C, H, W = x.shape
    Cb = 128
    # Layout plumbing only: in a real NHWC graph these transposes disappear.
    x_t = jnp.transpose(x, (0, 2, 3, 1))                    # (N, H, W, C)
    w_t = jnp.transpose(w_eff, (1, 2, 0))                   # (k, k, C)
    b_t = b_f32.reshape(1, C)
    kernel = functools.partial(_adafm_nhwc_kernel, k=k, pad=pad, H=H, W=W)
    out_t = pl.pallas_call(
        kernel,
        out_shape=jax.ShapeDtypeStruct((N, H, W, C), x.dtype),
        grid=(N, C // Cb),
        in_specs=[
            pl.BlockSpec((1, H, W, Cb), lambda n, cb: (n, 0, 0, cb)),
            pl.BlockSpec((k, k, Cb), lambda n, cb: (0, 0, cb)),       # resident params
            pl.BlockSpec((1, Cb), lambda n, cb: (0, cb)),             # resident params
        ],
        out_specs=pl.BlockSpec((1, H, W, Cb), lambda n, cb: (n, 0, 0, cb)),
        compiler_params=pltpu.CompilerParams(
            dimension_semantics=("parallel", "parallel"),
            vmem_limit_bytes=vmem_limit,
        ),
    )(x_t, w_t, b_t)
    return jnp.transpose(out_t, (0, 3, 1, 2))


def adaptive_fm(x, weight, bias, kernel_size):
    """x: (N, C, H, W); weight: (C, 1, k, k); bias: (C,). Returns (N, C, H, W)."""
    N, C, H, W = x.shape
    k = int(kernel_size)
    assert k % 2 == 1, "AdaptiveFM requires odd kernel_size for 'same' padding"
    pad = (k - 1) // 2

    # Fuse the residual into the conv: conv(x, W') + b == conv(x, W) + b + x when
    # W'[c, pad, pad] = W[c, pad, pad] + 1  (parameter-sized work, done once here).
    w_eff = weight[:, 0, :, :].astype(jnp.float32)          # (C, k, k)
    w_eff = w_eff.at[:, pad, pad].add(1.0)
    b_f32 = bias.astype(jnp.float32)

    budget = _vmem_budget_bytes()
    itm = jnp.dtype(x.dtype).itemsize
    r8 = lambda v: -(-v // 8) * 8
    r128 = lambda v: -(-v // 128) * 128

    # C-on-lanes (NHWC) path only for clean multiples of 128 channels whose
    # whole-plane block + padded f32 temp fit the VMEM budget; everything else
    # takes the NCHW-native path (W on lanes, SMEM scalar params) so small C
    # never collapses to ~3% lane utilization.
    if C % 128 == 0:
        blk_a = H * r8(W) * 128 * itm
        xp_a = (H + 2 * pad) * r8(W + 2 * pad) * 128 * 4
        need_a = 4 * blk_a + 3 * xp_a + (k * k + 8) * 128 * 4
        if need_a <= budget:
            return _adaptive_fm_nhwc(x, w_eff, b_f32, k=k, pad=pad, vmem_limit=budget)

    blk_b = r8(H) * r128(W) * itm
    xp_b = r8(H + 2 * pad) * r128(W + 2 * pad) * 4
    need_b = 4 * blk_b + 3 * xp_b
    if need_b > budget:
        # TODO(synk): halo-tiled spatial (H) blocking for planes too large for VMEM.
        raise ValueError(
            f"AdaptiveFM plane ({H}x{W}) exceeds the VMEM budget ({budget} bytes); "
            "spatial tiling with halo is not implemented.")
    return _adaptive_fm_nchw(x, w_eff, b_f32, k=k, pad=pad, vmem_limit=budget)


# ---------------------------------------------------------------------------
# Pure-JAX reference (matches nn.Conv2d(C, C, k, padding=(k-1)//2, groups=C) + x)
# ---------------------------------------------------------------------------

def adaptive_fm_ref(x, weight, bias, kernel_size):
    C = x.shape[1]
    pad = (kernel_size - 1) // 2
    y = jax.lax.conv_general_dilated(
        x, weight,
        window_strides=(1, 1),
        padding=((pad, pad), (pad, pad)),
        dimension_numbers=("NCHW", "OIHW", "NCHW"),
        feature_group_count=C,
    )
    return y + bias.reshape(1, C, 1, 1) + x


if __name__ == "__main__":
    key = jax.random.PRNGKey(0)
    kx, kw, kb = jax.random.split(key, 3)
    ksize = 3

    # Test 1: module-sized shapes (small C -> NCHW-native path, no transposes).
    N, C, H, W = 2, 4, 16, 16
    x = jax.random.normal(kx, (N, C, H, W), dtype=jnp.float32)
    weight = jax.random.normal(kw, (C, 1, ksize, ksize), dtype=jnp.float32) * 0.1
    bias = jax.random.normal(kb, (C,), dtype=jnp.float32) * 0.1
    out = jax.block_until_ready(adaptive_fm(x, weight, bias, ksize))
    ref = adaptive_fm_ref(x, weight, bias, ksize)
    assert out.shape == (N, C, H, W)
    assert jnp.allclose(out, ref, atol=1e-5, rtol=1e-5), "NCHW path mismatch vs reference"

    # Test 2: C = 128 exercises the C-on-lanes NHWC path.
    N2, C2, H2, W2 = 1, 128, 8, 8
    x2 = jax.random.normal(kx, (N2, C2, H2, W2), dtype=jnp.float32)
    w2 = jax.random.normal(kw, (C2, 1, ksize, ksize), dtype=jnp.float32) * 0.1
    b2 = jax.random.normal(kb, (C2,), dtype=jnp.float32) * 0.1
    out2 = jax.block_until_ready(adaptive_fm(x2, w2, b2, ksize))
    ref2 = adaptive_fm_ref(x2, w2, b2, ksize)
    assert jnp.allclose(out2, ref2, atol=1e-5, rtol=1e-5), "NHWC path mismatch vs reference"

    print("KERNEL_OK")
</pallas_src>

<mosaic_0001>
module attributes {stable_mosaic.version = 11 : i64} {
  func.func @_adafm_nchw_kernel(%arg0: i32, %arg1: i32, %arg2: memref<36xf32, #tpu.memory_space<smem>>, %arg3: memref<4xf32, #tpu.memory_space<smem>>, %arg4: memref<1x1x16x16xf32, #tpu.memory_space<vmem>>, %arg5: memref<1x1x16x16xf32, #tpu.memory_space<vmem>>) attributes {dimension_semantics = [#tpu.dimension_semantics<parallel>, #tpu.dimension_semantics<parallel>], iteration_bounds = array<i64: 2, 4>, scalar_prefetch = 0 : i64, scratch_operands = 0 : i64, tpu.core_type = #tpu.core_type<tc>, window_params = [{transform_indices = @transform_0, window_bounds = array<i64: 36>}, {transform_indices = @transform_1, window_bounds = array<i64: 4>}, {transform_indices = @transform_2, window_bounds = array<i64: 1, 1, 16, 16>}, {transform_indices = @transform_3, window_bounds = array<i64: 1, 1, 16, 16>}]} {
    %c0 = arith.constant 0 : index
    %c0_0 = arith.constant 0 : index
    %c0_1 = arith.constant 0 : index
    %c0_2 = arith.constant 0 : index
    %0 = vector.load %arg4[%c0, %c0_0, %c0_1, %c0_2] : memref<1x1x16x16xf32, #tpu.memory_space<vmem>>, vector<1x1x16x16xf32>
    %1 = vector.shape_cast %0 : vector<1x1x16x16xf32> to vector<16x16xf32>
    %cst = arith.constant 0.000000e+00 : f32
    %2 = vector.broadcast %cst : f32 to vector<1x16xf32>
    %3 = tpu.concatenate %2, %1, %2 in 0 : vector<1x16xf32>, vector<16x16xf32>, vector<1x16xf32> -> vector<18x16xf32>
    %cst_3 = arith.constant 0.000000e+00 : f32
    %4 = vector.broadcast %cst_3 : f32 to vector<18x1xf32>
    %5 = tpu.concatenate %4, %3, %4 in 1 : vector<18x1xf32>, vector<18x16xf32>, vector<18x1xf32> -> vector<18x18xf32>
    %cst_4 = arith.constant 0.000000e+00 : f32
    %6 = vector.broadcast %cst_4 : f32 to vector<16x16xf32>
    %7 = arith.index_cast %arg1 : i32 to index
    %8 = memref.load %arg3[%7] : memref<4xf32, #tpu.memory_space<smem>>
    %9 = vector.broadcast %8 : f32 to vector<16x16xf32>
    %10 = arith.addf %6, %9 : vector<16x16xf32>
    %c9_i32 = arith.constant 9 : i32
    %11 = arith.muli %arg1, %c9_i32 : i32
    %c0_i32 = arith.constant 0 : i32
    %12 = arith.addi %11, %c0_i32 : i32
    %c0_i32_5 = arith.constant 0 : i32
    %13 = arith.addi %12, %c0_i32_5 : i32
    %14 = arith.index_cast %13 : i32 to index
    %15 = memref.load %arg2[%14] : memref<36xf32, #tpu.memory_space<smem>>
    %16 = vector.extract_strided_slice %5 {offsets = [0, 0], sizes = [16, 16], strides = [1, 1]} : vector<18x18xf32> to vector<16x16xf32>
    %17 = vector.broadcast %15 : f32 to vector<16x16xf32>
    %18 = arith.mulf %17, %16 : vector<16x16xf32>
    %19 = arith.addf %10, %18 : vector<16x16xf32>
    %c0_i32_6 = arith.constant 0 : i32
    %20 = arith.addi %11, %c0_i32_6 : i32
    %c1_i32 = arith.constant 1 : i32
    %21 = arith.addi %20, %c1_i32 : i32
    %22 = arith.index_cast %21 : i32 to index
    %23 = memref.load %arg2[%22] : memref<36xf32, #tpu.memory_space<smem>>
    %24 = vector.extract_strided_slice %5 {offsets = [0, 1], sizes = [16, 16], strides = [1, 1]} : vector<18x18xf32> to vector<16x16xf32>
    %25 = vector.broadcast %23 : f32 to vector<16x16xf32>
    %26 = arith.mulf %25, %24 : vector<16x16xf32>
    %27 = arith.addf %19, %26 : vector<16x16xf32>
    %c0_i32_7 = arith.constant 0 : i32
    %28 = arith.addi %11, %c0_i32_7 : i32
    %c2_i32 = arith.constant 2 : i32
    %29 = arith.addi %28, %c2_i32 : i32
    %30 = arith.index_cast %29 : i32 to index
    %31 = memref.load %arg2[%30] : memref<36xf32, #tpu.memory_space<smem>>
    %32 = vector.extract_strided_slice %5 {offsets = [0, 2], sizes = [16, 16], strides = [1, 1]} : vector<18x18xf32> to vector<16x16xf32>
    %33 = vector.broadcast %31 : f32 to vector<16x16xf32>
    %34 = arith.mulf %33, %32 : vector<16x16xf32>
    %35 = arith.addf %27, %34 : vector<16x16xf32>
    %c3_i32 = arith.constant 3 : i32
    %36 = arith.addi %11, %c3_i32 : i32
    %c0_i32_8 = arith.constant 0 : i32
    %37 = arith.addi %36, %c0_i32_8 : i32
    %38 = arith.index_cast %37 : i32 to index
    %39 = memref.load %arg2[%38] : memref<36xf32, #tpu.memory_space<smem>>
    %40 = vector.extract_strided_slice %5 {offsets = [1, 0], sizes = [16, 16], strides = [1, 1]} : vector<18x18xf32> to vector<16x16xf32>
    %41 = vector.broadcast %39 : f32 to vector<16x16xf32>
    %42 = arith.mulf %41, %40 : vector<16x16xf32>
    %43 = arith.addf %35, %42 : vector<16x16xf32>
    %c3_i32_9 = arith.constant 3 : i32
    %44 = arith.addi %11, %c3_i32_9 : i32
    %c1_i32_10 = arith.constant 1 : i32
    %45 = arith.addi %44, %c1_i32_10 : i32
    %46 = arith.index_cast %45 : i32 to index
    %47 = memref.load %arg2[%46] : memref<36xf32, #tpu.memory_space<smem>>
    %48 = vector.extract_strided_slice %5 {offsets = [1, 1], sizes = [16, 16], strides = [1, 1]} : vector<18x18xf32> to vector<16x16xf32>
    %49 = vector.broadcast %47 : f32 to vector<16x16xf32>
    %50 = arith.mulf %49, %48 : vector<16x16xf32>
    %51 = arith.addf %43, %50 : vector<16x16xf32>
    %c3_i32_11 = arith.constant 3 : i32
    %52 = arith.addi %11, %c3_i32_11 : i32
    %c2_i32_12 = arith.constant 2 : i32
    %53 = arith.addi %52, %c2_i32_12 : i32
    %54 = arith.index_cast %53 : i32 to index
    %55 = memref.load %arg2[%54] : memref<36xf32, #tpu.memory_space<smem>>
    %56 = vector.extract_strided_slice %5 {offsets = [1, 2], sizes = [16, 16], strides = [1, 1]} : vector<18x18xf32> to vector<16x16xf32>
    %57 = vector.broadcast %55 : f32 to vector<16x16xf32>
    %58 = arith.mulf %57, %56 : vector<16x16xf32>
    %59 = arith.addf %51, %58 : vector<16x16xf32>
    %c6_i32 = arith.constant 6 : i32
    %60 = arith.addi %11, %c6_i32 : i32
    %c0_i32_13 = arith.constant 0 : i32
    %61 = arith.addi %60, %c0_i32_13 : i32
    %62 = arith.index_cast %61 : i32 to index
    %63 = memref.load %arg2[%62] : memref<36xf32, #tpu.memory_space<smem>>
    %64 = vector.extract_strided_slice %5 {offsets = [2, 0], sizes = [16, 16], strides = [1, 1]} : vector<18x18xf32> to vector<16x16xf32>
    %65 = vector.broadcast %63 : f32 to vector<16x16xf32>
    %66 = arith.mulf %65, %64 : vector<16x16xf32>
    %67 = arith.addf %59, %66 : vector<16x16xf32>
    %c6_i32_14 = arith.constant 6 : i32
    %68 = arith.addi %11, %c6_i32_14 : i32
    %c1_i32_15 = arith.constant 1 : i32
    %69 = arith.addi %68, %c1_i32_15 : i32
    %70 = arith.index_cast %69 : i32 to index
    %71 = memref.load %arg2[%70] : memref<36xf32, #tpu.memory_space<smem>>
    %72 = vector.extract_strided_slice %5 {offsets = [2, 1], sizes = [16, 16], strides = [1, 1]} : vector<18x18xf32> to vector<16x16xf32>
    %73 = vector.broadcast %71 : f32 to vector<16x16xf32>
    %74 = arith.mulf %73, %72 : vector<16x16xf32>
    %75 = arith.addf %67, %74 : vector<16x16xf32>
    %c6_i32_16 = arith.constant 6 : i32
    %76 = arith.addi %11, %c6_i32_16 : i32
    %c2_i32_17 = arith.constant 2 : i32
    %77 = arith.addi %76, %c2_i32_17 : i32
    %78 = arith.index_cast %77 : i32 to index
    %79 = memref.load %arg2[%78] : memref<36xf32, #tpu.memory_space<smem>>
    %80 = vector.extract_strided_slice %5 {offsets = [2, 2], sizes = [16, 16], strides = [1, 1]} : vector<18x18xf32> to vector<16x16xf32>
    %81 = vector.broadcast %79 : f32 to vector<16x16xf32>
    %82 = arith.mulf %81, %80 : vector<16x16xf32>
    %83 = arith.addf %75, %82 : vector<16x16xf32>
    %c0_18 = arith.constant 0 : index
    %c0_19 = arith.constant 0 : index
    %c0_20 = arith.constant 0 : index
    %c0_21 = arith.constant 0 : index
    %84 = vector.load %arg5[%c0_18, %c0_19, %c0_20, %c0_21] : memref<1x1x16x16xf32, #tpu.memory_space<vmem>>, vector<1x1x16x16xf32>
    %85 = vector.shape_cast %84 : vector<1x1x16x16xf32> to vector<16x16xf32>
    %86 = vector.shape_cast %83 : vector<16x16xf32> to vector<1x1x16x16xf32>
    tpu.vector_store %arg5[%c0_18, %c0_19, %c0_20, %c0_21], %86 {strides = array<i32>} : memref<1x1x16x16xf32, #tpu.memory_space<vmem>>, vector<1x1x16x16xf32>,
    return
  }
  func.func @transform_0(%arg0: i32, %arg1: i32) -> i32 {
    %c0_i32 = arith.constant 0 : i32
    %c0_i32_0 = arith.constant 0 : i32
    return %c0_i32 : i32
  }
  func.func @transform_1(%arg0: i32, %arg1: i32) -> i32 {
    %c0_i32 = arith.constant 0 : i32
    %c0_i32_0 = arith.constant 0 : i32
    return %c0_i32 : i32
  }
  func.func @transform_2(%arg0: i32, %arg1: i32) -> (i32, i32, i32, i32) {
    %c0_i32 = arith.constant 0 : i32
    %c0_i32_0 = arith.constant 0 : i32
    %c0_i32_1 = arith.constant 0 : i32
    return %arg0, %arg1, %c0_i32, %c0_i32_0 : i32, i32, i32, i32
  }
  func.func @transform_3(%arg0: i32, %arg1: i32) -> (i32, i32, i32, i32) {
    %c0_i32 = arith.constant 0 : i32
    %c0_i32_0 = arith.constant 0 : i32
    %c0_i32_1 = arith.constant 0 : i32
    return %arg0, %arg1, %c0_i32, %c0_i32_0 : i32, i32, i32, i32
  }
}

</mosaic_0001>

<llo_original>
// kernel: tpu_custom_call.1
$region0: #{tpu_custom_call.1}
  #allocation0 [shape = 'u32[]', space=smem, size = 0x4, offset = 0x4, fixed_abs, tag = 'smem constant byte address 0x4 - core index']
  #allocation1 [shape = 'u32[144,128]{1,0:T(1,128)}', space=vmem, size = 0x12000, scoped, tag = 'internal scratch']
  %s0 = inlined_call_operand.hbm [shape: f32[36], index: 0, kind: input, shape index: {}]
  %s1 = inlined_call_operand.vmem [shape: f32[4], index: 1, kind: input, shape index: {}]
  %s2 = inlined_call_operand.hbm [shape: f32[2,4,16,16], index: 2, kind: input, shape index: {}]
  %s3 = inlined_call_operand.hbm [shape: f32[2,4,16,16], index: 3, kind: output, shape index: {}]
  %s4 = sld [smem:[#allocation0]]
  $region57: #{tpu_custom_call.1} parent=0
    _
  %s6 = ssub.s32 1, %s4
  %s7 = scalar_select 0, %s6, %s4
  $region1: #{tpu_custom_call.1} parent=0
    #allocation2 [shape = 'u8[512]{0}', space=smem, size = 0x200, scoped, tag = 'input window, operand 0, single buffered']
    #allocation3 [shape = 's32[2]{0}', space=sflag, size = 0x8, scoped, tag = 'scoped memory for tpu_custom_call.1']
    #allocation4 [shape = 's32[2]{0}', space=sflag, size = 0x8, scoped, tag = 'scoped memory for tpu_custom_call.1']
    #allocation5 [shape = 's32[2]{0}', space=sflag, size = 0x8, scoped, tag = 'scoped memory for tpu_custom_call.1']
    #allocation6 [shape = 's32[2]{0}', space=sflag, size = 0x8, scoped, tag = 'scoped memory for tpu_custom_call.1']
    #allocation7 [shape = 'u8[512]{0}', space=smem, size = 0x200, scoped, tag = 'input window, operand 1, single buffered']
    #allocation8 [shape = 'u8[16384]{0}', space=vmem, size = 0x4000, scoped, tag = 'input window, operand 2']
    #allocation9 [shape = 'u8[16384]{0}', space=vmem, size = 0x4000, scoped, tag = 'output window, operand 0']
    %8 = vsyncpa [#allocation5], 0
    %9 = vsyncpa [#allocation6], 0
    %10 = vsyncpa [#allocation3], 0
    %s11 = scalar_lea.sflag [#allocation3], 1
    %12 = vsyncpa %s11, 0
    %13 = vsyncpa [#allocation4], 0
    %s14 = scalar_lea.sflag [#allocation4], 1
    %15 = vsyncpa %s14, 0
    loop: start=0, step=1, limit=10
    $region2: #{tpu_custom_call.1} parent=1 // loop_pre_header
      _
    $region3: #{tpu_custom_call.1} parent=1 // loop_header
      %s17 = sphi 0, %s21
      %p18 = scmp.ge.s32.totalorder %s17, 10
      %s24 = sphi 0, %s36
      %s25 = sphi 0, %s32
      %s26 = sphi 0, %s24
      %s27 = sphi 0, %s25
      %s28 = sphi 0, %s26
      %s29 = sphi 0, %s27
      %s37 = sphi 0, %s37
      %s39 = sphi 0, %s37
      %s40 = sphi 0, %s39
      %s54 = sphi 0, %s40
      %s58 = sphi 0, %s58
      %s60 = sphi 0, %s58
      %s61 = sphi 0, %s60
      %s75 = sphi 0, %s61
      %s83 = sphi 0, %s85
      %s86 = sphi 0, %s83
      %s87 = sphi 0, %s86
      %s103 = sphi 0, %s87
      %s111 = sphi 0, %s113
      %s114 = sphi 0, %s111
      %s115 = sphi 0, %s114
      %s131 = sphi 0, %s115
    $region4: #{tpu_custom_call.1} parent=1 // loop_header_branch
      %20 = sbr.rel (%p18) target = $region8
    $region5: #{tpu_custom_call.1} parent=1 // loop_body
      %s22 = ssub.s32 %s17, 1
      %s23 = ssub.s32 %s17, 2
      %s30 = sadd.s32 1, %s25
      %p31 = scmp.ge.s32.totalorder %s30, 4
      %s32 = scalar_select %p31, 0, %s30
      %s33 = sadd.s32 1, %s24
      %s34 = scalar_select %p31, %s33, %s24
      %p35 = scmp.ge.s32.totalorder %s34, 2
      %s36 = scalar_select %p35, 0, %s34
      %s38 = sadd.s32 %s37, 1
      %p41 = scmp.eq.s32.totalorder %s17, 7
      %p42 = scmp.ne.s32.totalorder %s37, %s39
      %p43 = scmp.eq.s32.totalorder %s17, 0
      %p44 = por %p42, %p43
      %p45 = scmp.ne.s32.totalorder %s37, %s39
      %p46 = scmp.eq.s32.totalorder %s22, 7
      %p47 = por %p45, %p46
      %p48 = scmp.ne.s32.totalorder %s39, %s40
      %p49 = scmp.eq.s32.totalorder %s22, 0
      %p50 = por %p48, %p49
      %p51 = scmp.ne.s32.totalorder %s39, %s40
      %p52 = scmp.eq.s32.totalorder %s23, 7
      %p53 = por %p51, %p52
      %p55 = scmp.ne.s32.totalorder %s40, %s54
      %p56 = scmp.eq.s32.totalorder %s23, 0
      %p57 = por %p55, %p56
      %s59 = sadd.s32 %s58, 1
      %p62 = scmp.eq.s32.totalorder %s17, 7
      %p63 = scmp.ne.s32.totalorder %s58, %s60
      %p64 = scmp.eq.s32.totalorder %s17, 0
      %p65 = por %p63, %p64
      %p66 = scmp.ne.s32.totalorder %s58, %s60
      %p67 = scmp.eq.s32.totalorder %s22, 7
      %p68 = por %p66, %p67
      %p69 = scmp.ne.s32.totalorder %s60, %s61
      %p70 = scmp.eq.s32.totalorder %s22, 0
      %p71 = por %p69, %p70
      %p72 = scmp.ne.s32.totalorder %s60, %s61
      %p73 = scmp.eq.s32.totalorder %s23, 7
      %p74 = por %p72, %p73
      %p76 = scmp.ne.s32.totalorder %s61, %s75
      %p77 = scmp.eq.s32.totalorder %s23, 0
      %p78 = por %p76, %p77
      %s79 = ssub.s32 %s24, %s36
      %s80 = ssub.s32 %s25, %s32
      %s81 = sor.u32 %s79, %s80
      %p82 = scmp.eq.s32.totalorder %s81, 0
      %s84 = sadd.s32 %s83, 1
      %s85 = scalar_select %p82, %s83, %s84
      %p88 = pneg %p82
      %p89 = scmp.eq.s32.totalorder %s17, 7
      %p90 = por %p88, %p89
      %p91 = scmp.ne.s32.totalorder %s83, %s86
      %p92 = scmp.eq.s32.totalorder %s17, 0
      %p93 = por %p91, %p92
      %p94 = scmp.ne.s32.totalorder %s83, %s86
      %p95 = scmp.eq.s32.totalorder %s22, 7
      %p96 = por %p94, %p95
      %p97 = scmp.ne.s32.totalorder %s86, %s87
      %p98 = scmp.eq.s32.totalorder %s22, 0
      %p99 = por %p97, %p98
      %p100 = scmp.ne.s32.totalorder %s86, %s87
      %p101 = scmp.eq.s32.totalorder %s23, 7
      %p102 = por %p100, %p101
      %p104 = scmp.ne.s32.totalorder %s87, %s103
      %p105 = scmp.eq.s32.totalorder %s23, 0
      %p106 = por %p104, %p105
      %s107 = ssub.s32 %s24, %s36
      %s108 = ssub.s32 %s25, %s32
      %s109 = sor.u32 %s107, %s108
      %p110 = scmp.eq.s32.totalorder %s109, 0
      %s112 = sadd.s32 %s111, 1
      %s113 = scalar_select %p110, %s111, %s112
      %p116 = pneg %p110
      %p117 = scmp.eq.s32.totalorder %s17, 7
      %p118 = por %p116, %p117
      %p119 = scmp.ne.s32.totalorder %s111, %s114
      %p120 = scmp.eq.s32.totalorder %s17, 0
      %p121 = por %p119, %p120
      %p122 = scmp.ne.s32.totalorder %s111, %s114
      %p123 = scmp.eq.s32.totalorder %s22, 7
      %p124 = por %p122, %p123
      %p125 = scmp.ne.s32.totalorder %s114, %s115
      %p126 = scmp.eq.s32.totalorder %s22, 0
      %p127 = por %p125, %p126
      %p128 = scmp.ne.s32.totalorder %s114, %s115
      %p129 = scmp.eq.s32.totalorder %s23, 7
      %p130 = por %p128, %p129
      %p132 = scmp.ne.s32.totalorder %s115, %s131
      %p133 = scmp.eq.s32.totalorder %s23, 0
      %p134 = por %p132, %p133
      %p135 = scmp.le.s32.totalorder 1, %s17
      %p136 = scmp.lt.s32.totalorder %s17, 9
      %p137 = pnand %p135, %p136
      %p138 = pneg %p137
      // Predicated region
      $region9: #{tpu_custom_call.1} parent=5 // pred_check
        _
      $region10: #{tpu_custom_call.1} parent=5 // pred_check_branch
        %140 = sbr.rel (%p137) target = $region12
      $region11: #{tpu_custom_call.1} parent=5 // pred_region
        %s141 = ssub.s32 %s17, 1
        // Predicated region
        $region13: #{tpu_custom_call.1} parent=11 // pred_check
          %p142 = pneg %p50
        $region14: #{tpu_custom_call.1} parent=11 // pred_check_branch
          %144 = sbr.rel (%p142) target = $region16
        $region15: #{tpu_custom_call.1} parent=11 // pred_region
          %s146 = ssub.s32 16, 16
          %147 = vsyncadd [#allocation5], %s146
          %150 = dma.hbm_to_smem %s0, 16, [#allocation2], [#allocation5]
        $region16: #{tpu_custom_call.1} parent=11 // pred_fallthru
          _
        // Predicated region
        $region17: #{tpu_custom_call.1} parent=11 // pred_check
          %p151 = pneg %p71
        $region18: #{tpu_custom_call.1} parent=11 // pred_check_branch
          %153 = sbr.rel (%p151) target = $region20
        $region19: #{tpu_custom_call.1} parent=11 // pred_region
          %s155 = ssub.s32 16, 16
          %156 = vsyncadd [#allocation6], %s155
          %s158 = sshll.u32 %s1, 4
          %s159 = int_to_ptr.vmem [resolvable:$true] %s158
          %161 = dma.vmem_to_smem %s159, 16, [#allocation7], [#allocation6]
        $region20: #{tpu_custom_call.1} parent=11 // pred_fallthru
          _
      $region12: #{tpu_custom_call.1} parent=5 // pred_fallthru
        _
      %p162 = scmp.lt.s32.totalorder %s17, 8
      // Predicated region
      $region21: #{tpu_custom_call.1} parent=5 // pred_check
        %p163 = pneg %p162
      $region22: #{tpu_custom_call.1} parent=5 // pred_check_branch
        %165 = sbr.rel (%p163) target = $region24
      $region23: #{tpu_custom_call.1} parent=5 // pred_region
        // Predicated region
        $region25: #{tpu_custom_call.1} parent=23 // pred_check
          %p166 = pneg %p93
        $region26: #{tpu_custom_call.1} parent=23 // pred_check_branch
          %168 = sbr.rel (%p166) target = $region28
        $region27: #{tpu_custom_call.1} parent=23 // pred_region
          %s169 = sand.u32 %s83, 1
          %s170 = scalar_lea.sflag [#allocation3], %s169
          %s171 = sand.u32 %s83, 1
          %s172 = smul.addr %s171, 16
          %s173 = scalar_lea.vmem [#allocation8], %s172
          %s175 = ssub.s32 256, 256
          %176 = vsyncadd %s170, %s175
          %s177 = smul.addr %s25, 2
          %s178 = smul.addr %s24, 8
          %s179 = sadd.s32 %s177, %s178
          %s180 = smul.addr %s179, 128
          %s181 = scalar_lea.hbm %s2, %s180
          %s182 = sshll.u32 %s173, 4
          %s183 = int_to_ptr.vmem [resolvable:$true] %s182
          %188 = dma.hbm_to_vmem [thread:$0]  %s181, 256, %s183, %s170, 128, 128, 8
        $region28: #{tpu_custom_call.1} parent=23 // pred_fallthru
          _
      $region24: #{tpu_custom_call.1} parent=5 // pred_fallthru
        _
      %p189 = scmp.le.s32.totalorder 1, %s17
      %p190 = scmp.lt.s32.totalorder %s17, 9
      %p191 = pnand %p189, %p190
      %p192 = pneg %p191
      // Predicated region
      $region29: #{tpu_custom_call.1} parent=5 // pred_check
        _
      $region30: #{tpu_custom_call.1} parent=5 // pred_check_branch
        %194 = sbr.rel (%p191) target = $region32
      $region31: #{tpu_custom_call.1} parent=5 // pred_region
        %s195 = ssub.s32 %s17, 1
        // Predicated region
        $region33: #{tpu_custom_call.1} parent=31 // pred_check
          %p196 = pneg %p50
        $region34: #{tpu_custom_call.1} parent=31 // pred_check_branch
          %198 = sbr.rel (%p196) target = $region36
        $region35: #{tpu_custom_call.1} parent=31 // pred_region
          %199 = dma.done [#allocation5], 16
        $region36: #{tpu_custom_call.1} parent=31 // pred_fallthru
          _
        // Predicated region
        $region37: #{tpu_custom_call.1} parent=31 // pred_check
          %p200 = pneg %p71
        $region38: #{tpu_custom_call.1} parent=31 // pred_check_branch
          %202 = sbr.rel (%p200) target = $region40
        $region39: #{tpu_custom_call.1} parent=31 // pred_region
          %203 = dma.done [#allocation6], 16
        $region40: #{tpu_custom_call.1} parent=31 // pred_fallthru
          _
        %s204 = sand.u32 %s86, 1
        %s205 = scalar_lea.sflag [#allocation3], %s204
        %s206 = sand.u32 %s86, 1
        %s207 = smul.addr %s206, 16
        %s208 = scalar_lea.vmem [#allocation8], %s207
        // Predicated region
        $region41: #{tpu_custom_call.1} parent=31 // pred_check
          %p209 = pneg %p99
        $region42: #{tpu_custom_call.1} parent=31 // pred_check_branch
          %211 = sbr.rel (%p209) target = $region44
        $region43: #{tpu_custom_call.1} parent=31 // pred_region
          %212 = dma.done %s205, 256
        $region44: #{tpu_custom_call.1} parent=31 // pred_fallthru
          _
        %213 = sfence
        %p214 = pneg %p50
        %p215 = pneg %p47
        %p216 = pneg %p71
        %p217 = pneg %p68
        %s218 = sand.u32 %s86, 1
        %s219 = scalar_lea.sflag [#allocation3], %s218
        %s220 = sand.u32 %s86, 1
        %s221 = smul.addr %s220, 16
        %s222 = scalar_lea.vmem [#allocation8], %s221
        %p223 = pneg %p99
        %p224 = pneg %p96
        %p225 = pneg %p127
        %p226 = pneg %p124
        %s227 = sand.u32 %s114, 1
        %s228 = scalar_lea.sflag [#allocation4], %s227
        %s229 = sand.u32 %s114, 1
        %s230 = smul.addr %s229, 16
        %s231 = scalar_lea.vmem [#allocation9], %s230
        %v232 = vld [vmem:[%s208] sm:$0xff]
        %v233 = vld [vmem:[%s208 + $0x8] sm:$0xff]
        %vm236 = vcmask 1040384
        %v237 = vrot.slane %v232, 7
        %v238 = vrot.slane %v233, 7
        %v239 = vsel %vm236, %v237, %v238
        %v242 = vsel %vm236, 0.0, %v237
        %v243 = vsel %vm236, %v238, 0.0
        %246 = vrot.lane.b32.xlu0 %v242, 1
        %v247 = vpop.permute.xlu0 %246
        %248 = vrot.lane.b32.xlu0 %v239, 1
        %v249 = vpop.permute.xlu0 %248
        %250 = vrot.lane.b32.xlu0 %v243, 1
        %v251 = vpop.permute.xlu0 %250
        %vm255 = vcmask 7168
        %v256 = vsel %vm255, 0.0, %v247
        %v257 = vsel %vm255, 0.0, %v249
        %v258 = vsel %vm255, 0.0, %v251
        %vm259 = vcmask 138240
        %v260 = vsel %vm259, %v256, 0.0
        %v261 = vsel %vm259, %v257, 0.0
        %v262 = vsel %vm259, %v258, 0.0
        %s263 = sld [smem:[#allocation7 + %s27]]
        %v264 = vstv %s263
        %v265 = vadd.f32 %v264, 0.0
        %s266 = smul.u32 %s27, 9
        %s267 = sld [smem:[#allocation2 + %s266]]
        %v268 = vstv %s267
        %v269 = vmul.f32 %v268, %v260
        %v270 = vmul.f32 %v268, %v261
        %v271 = vadd.f32 %v265, %v269
        %v272 = vadd.f32 %v265, %v270
        %s273 = sadd.s32 %s266, 1
        %s274 = sld [smem:[#allocation2 + %s273]]
        %v275 = vstv %s274
        %v276 = vmul.f32 %v275, %v260
        %v277 = vmul.f32 %v275, %v261
        %280 = vrot.lane.b32.xlu0 %v276, 127
        %v281 = vpop.permute.xlu0 %280
        %282 = vrot.lane.b32.xlu0 %v277, 127
        %v283 = vpop.permute.xlu0 %282
        %v286 = vadd.f32 %v271, %v281
        %v287 = vadd.f32 %v272, %v283
        %s288 = sadd.s32 %s266, 2
        %s289 = sld [smem:[#allocation2 + %s288]]
        %v290 = vstv %s289
        %v291 = vmul.f32 %v290, %v260
        %v292 = vmul.f32 %v290, %v261
        %295 = vrot.lane.b32.xlu0 %v291, 126
        %v296 = vpop.permute.xlu0 %295
        %297 = vrot.lane.b32.xlu0 %v292, 126
        %v298 = vpop.permute.xlu0 %297
        %v301 = vadd.f32 %v286, %v296
        %v302 = vadd.f32 %v287, %v298
        %s303 = sadd.s32 %s266, 3
        %s304 = sld [smem:[#allocation2 + %s303]]
        %v305 = vstv %s304
        %v306 = vmul.f32 %v305, %v260
        %v307 = vmul.f32 %v305, %v261
        %v308 = vmul.f32 %v305, %v262
        %vm312 = vcmask 1046528
        %v313 = vrot.slane %v306, 1
        %v314 = vrot.slane %v307, 1
        %v315 = vsel %vm312, %v313, %v314
        %v316 = vrot.slane %v308, 1
        %v317 = vsel %vm312, %v314, %v316
        %v320 = vadd.f32 %v301, %v315
        %v321 = vadd.f32 %v302, %v317
        %s322 = sadd.s32 %s266, 4
        %s323 = sld [smem:[#allocation2 + %s322]]
        %v324 = vstv %s323
        %v325 = vmul.f32 %v324, %v260
        %v326 = vmul.f32 %v324, %v261
        %v327 = vmul.f32 %v324, %v262
        %v331 = vrot.slane %v325, 1
        %v332 = vrot.slane %v326, 1
        %v333 = vsel %vm312, %v331, %v332
        %v334 = vrot.slane %v327, 1
        %v335 = vsel %vm312, %v332, %v334
        %336 = vrot.lane.b32.xlu0 %v333, 127
        %v337 = vpop.permute.xlu0 %336
        %338 = vrot.lane.b32.xlu0 %v335, 127
        %v339 = vpop.permute.xlu0 %338
        %v342 = vadd.f32 %v320, %v337
        %v343 = vadd.f32 %v321, %v339
        %s344 = sadd.s32 %s266, 5
        %s345 = sld [smem:[#allocation2 + %s344]]
        %v346 = vstv %s345
        %v347 = vmul.f32 %v346, %v260
        %v348 = vmul.f32 %v346, %v261
        %v349 = vmul.f32 %v346, %v262
        %v353 = vrot.slane %v347, 1
        %v354 = vrot.slane %v348, 1
        %v355 = vsel %vm312, %v353, %v354
        %v356 = vrot.slane %v349, 1
        %v357 = vsel %vm312, %v354, %v356
        %358 = vrot.lane.b32.xlu0 %v355, 126
        %v359 = vpop.permute.xlu0 %358
        %360 = vrot.lane.b32.xlu0 %v357, 126
        %v361 = vpop.permute.xlu0 %360
        %v364 = vadd.f32 %v342, %v359
        %v365 = vadd.f32 %v343, %v361
        %s366 = sadd.s32 %s266, 6
        %s367 = sld [smem:[#allocation2 + %s366]]
        %v368 = vstv %s367
        %v369 = vmul.f32 %v368, %v260
        %v370 = vmul.f32 %v368, %v261
        %v371 = vmul.f32 %v368, %v262
        %vm375 = vcmask 1045504
        %v376 = vrot.slane %v369, 2
        %v377 = vrot.slane %v370, 2
        %v378 = vsel %vm375, %v376, %v377
        %v379 = vrot.slane %v371, 2
        %v380 = vsel %vm375, %v377, %v379
        %v383 = vadd.f32 %v364, %v378
        %v384 = vadd.f32 %v365, %v380
        %s385 = sadd.s32 %s266, 7
        %s386 = sld [smem:[#allocation2 + %s385]]
        %v387 = vstv %s386
        %v388 = vmul.f32 %v387, %v260
        %v389 = vmul.f32 %v387, %v261
        %v390 = vmul.f32 %v387, %v262
        %v394 = vrot.slane %v388, 2
        %v395 = vrot.slane %v389, 2
        %v396 = vsel %vm375, %v394, %v395
        %v397 = vrot.slane %v390, 2
        %v398 = vsel %vm375, %v395, %v397
        %399 = vrot.lane.b32.xlu0 %v396, 127
        %v400 = vpop.permute.xlu0 %399
        %401 = vrot.lane.b32.xlu0 %v398, 127
        %v402 = vpop.permute.xlu0 %401
        %v405 = vadd.f32 %v383, %v400
        %v406 = vadd.f32 %v384, %v402
        %s407 = sadd.s32 %s266, 8
        %s408 = sld [smem:[#allocation2 + %s407]]
        %v409 = vstv %s408
        %v410 = vmul.f32 %v409, %v260
        %v411 = vmul.f32 %v409, %v261
        %v412 = vmul.f32 %v409, %v262
        %v416 = vrot.slane %v410, 2
        %v417 = vrot.slane %v411, 2
        %v418 = vsel %vm375, %v416, %v417
        %v419 = vrot.slane %v412, 2
        %v420 = vsel %vm375, %v417, %v419
        %421 = vrot.lane.b32.xlu0 %v418, 126
        %v422 = vpop.permute.xlu0 %421
        %423 = vrot.lane.b32.xlu0 %v420, 126
        %v424 = vpop.permute.xlu0 %423
        %v427 = vadd.f32 %v405, %v422
        %v428 = vadd.f32 %v406, %v424
        %vm429 = vcmask 130048
        %430 = vst.msk [vmem:[%s231] sm:$0xff] %vm429, %v427
        %431 = vst.msk [vmem:[%s231 + $0x8] sm:$0xff] %vm429, %v428
        %s432 = sand.u32 %s114, 1
        %s433 = scalar_lea.sflag [#allocation4], %s432
        %s434 = sand.u32 %s114, 1
        %s435 = smul.addr %s434, 16
        %s436 = scalar_lea.vmem [#allocation9], %s435
        // Predicated region
        $region45: #{tpu_custom_call.1} parent=31 // pred_check
          %p437 = pneg %p124
        $region46: #{tpu_custom_call.1} parent=31 // pred_check_branch
          %439 = sbr.rel (%p437) target = $region48
        $region47: #{tpu_custom_call.1} parent=31 // pred_region
          %s441 = ssub.s32 256, 256
          %442 = vsyncadd %s433, %s441
          %s443 = smul.addr %s27, 2
          %s444 = smul.addr %s26, 8
          %s445 = sadd.s32 %s443, %s444
          %s446 = smul.addr %s445, 128
          %s447 = scalar_lea.hbm %s3, %s446
          %s448 = sshll.u32 %s436, 4
          %s449 = int_to_ptr.vmem [resolvable:$true] %s448
          %454 = dma.vmem_to_hbm [thread:$0]  %s449, 256, %s447, %s433, 128, 128, 8
        $region48: #{tpu_custom_call.1} parent=31 // pred_fallthru
          _
      $region32: #{tpu_custom_call.1} parent=5 // pred_fallthru
        _
      %p455 = scmp.le.s32.totalorder 2, %s17
      // Predicated region
      $region49: #{tpu_custom_call.1} parent=5 // pred_check
        %p456 = pneg %p455
      $region50: #{tpu_custom_call.1} parent=5 // pred_check_branch
        %458 = sbr.rel (%p456) target = $region52
      $region51: #{tpu_custom_call.1} parent=5 // pred_region
        %s459 = ssub.s32 %s17, 2
        // Predicated region
        $region53: #{tpu_custom_call.1} parent=51 // pred_check
          %p460 = pneg %p130
        $region54: #{tpu_custom_call.1} parent=51 // pred_check_branch
          %462 = sbr.rel (%p460) target = $region56
        $region55: #{tpu_custom_call.1} parent=51 // pred_region
          %s463 = sand.u32 %s115, 1
          %s464 = scalar_lea.sflag [#allocation4], %s463
          %s465 = sand.u32 %s115, 1
          %s466 = smul.addr %s465, 16
          %s467 = scalar_lea.vmem [#allocation9], %s466
          %468 = dma.done %s464, 256
        $region56: #{tpu_custom_call.1} parent=51 // pred_fallthru
          _
      $region52: #{tpu_custom_call.1} parent=5 // pred_fallthru
        _
    $region6: #{tpu_custom_call.1} parent=1 // loop_footer
      %s21 = sadd.s32 1, %s17
    $region7: #{tpu_custom_call.1} parent=1 // loop_footer_branch
      %16 = sbr.rel target = $region3
    $region8: #{tpu_custom_call.1} parent=1 // loop_exit
      _
    %469 = vsyncpa [#allocation3], 1
    %s470 = scalar_lea.sflag [#allocation3], 1
    %471 = vsyncpa %s470, 1
    %472 = vsyncpa [#allocation4], 1
    %s473 = scalar_lea.sflag [#allocation4], 1
    %474 = vsyncpa %s473, 1
    %475 = vsyncpa [#allocation5], 1
    %s476 = scalar_lea.sflag [#allocation5], 1
    %477 = vsyncpa %s476, 1
    %478 = vsyncpa [#allocation6], 1
    %s479 = scalar_lea.sflag [#allocation6], 1
    %480 = vsyncpa %s479, 1

</llo_original>
